<compile_context>
chip_gen: v7x
topology: tpu7x:2x2x1
jax: 0.10.0
libtpu: 0.0.40
codegen_flags: <defaults>
</compile_context>

<pallas_src>
import jax
import jax.numpy as jnp
from jax.experimental import pallas as pl
from jax.experimental.pallas import tpu as pltpu

# ---- LIFParameters defaults (norse) ----
TAU_SYN_INV = 1.0 / 5e-3   # 200.0
TAU_MEM_INV = 1.0 / 1e-2   # 100.0
V_LEAK = 0.0
V_TH = 1.0
V_RESET = 0.0
DT = 1e-3


def _round_up(n, m):
    return ((n + m - 1) // m) * m


def _pick_block(total, candidates):
    """Largest candidate that divides `total` (total is already padded)."""
    for c in candidates:
        if c <= total and total % c == 0:
            return c
    return total


# --------------------------------------------------------------------------
# Kernel: one LIF Euler step on a (block_b, block_h) state tile.
# xz_ref   : (block_b, K)        bf16   packed [x | z_prev] (zero-padded)
# v_ref    : (block_b, block_h)  f32    previous membrane potential
# i_ref    : (block_b, block_h)  f32    previous synaptic current
# wcat_ref : (K, block_h)        bf16   packed [W_in.T ; W_rec.T] (zero-padded)
# --------------------------------------------------------------------------
def _lif_cell_kernel(xz_ref, v_ref, i_ref, wcat_ref,
                     z_out_ref, v_out_ref, i_out_ref):
    v = v_ref[...]
    i = i_ref[...]

    # Euler step of the membrane / synapse ODEs (f32 on the VPU).
    v_decayed = v + (DT * TAU_MEM_INV) * ((V_LEAK - v) + i)
    i_decayed = i - (DT * TAU_SYN_INV) * i

    # Spike + reset ("super" surrogate forward == heaviside).
    spike = v_decayed > V_TH
    z_new = spike.astype(v.dtype)
    v_new = jnp.where(spike, jnp.float32(V_RESET), v_decayed)

    # Fused input + recurrent projection on the MXU (bf16 in, f32 accumulate).
    proj = jnp.dot(xz_ref[...], wcat_ref[...],
                   preferred_element_type=jnp.float32)

    z_out_ref[...] = z_new
    v_out_ref[...] = v_new
    i_out_ref[...] = i_decayed + proj


def prepare_lif_weights(input_weights, recurrent_weights):
    """Transpose + pad + concat + bf16-cast the weights ONCE.

    For a recurrent time loop, call this outside the loop and pass the result
    to lif_cell_forward via `prepared=` so no per-step transpose/concat is paid.
    """
    H, IN = input_weights.shape
    H_pad = _round_up(H, 128)
    IN_pad = _round_up(IN, 128)
    K = IN_pad + H_pad
    wcat = jnp.zeros((K, H_pad), jnp.float32)
    wcat = wcat.at[:IN, :H].set(jnp.asarray(input_weights, jnp.float32).T)
    wcat = wcat.at[IN_pad:IN_pad + H, :H].set(
        jnp.asarray(recurrent_weights, jnp.float32).T)
    return wcat.astype(jnp.bfloat16), (IN, H, IN_pad, H_pad)


def lif_cell_forward(x, input_weights, recurrent_weights, state=None, *,
                     prepared=None):
    """One LIFCell step.

    x:                 (B, input_size)       float32
    input_weights:     (hidden, input_size)  (torch.nn.functional.linear layout)
    recurrent_weights: (hidden, hidden)
    state: optional (z, v, i), each (B, hidden). If None, zero-initialized
           (v initialized to v_leak), exactly like the PyTorch module.
    Returns (z_new, (z_new, v_new, i_new)).
    """
    if prepared is None:
        prepared = prepare_lif_weights(input_weights, recurrent_weights)
    wcat, (IN, H, IN_pad, H_pad) = prepared

    B = x.shape[0]
    dtype = x.dtype
    K = IN_pad + H_pad

    if state is None:
        z0 = jnp.zeros((B, H), jnp.float32)
        v0 = jnp.full((B, H), V_LEAK, jnp.float32)
        i0 = jnp.zeros((B, H), jnp.float32)
    else:
        z0, v0, i0 = (jnp.asarray(s, jnp.float32) for s in state)

    # Tiling: batch padded to a sublane multiple, hidden already lane-aligned.
    B_pad = _round_up(B, 8)
    block_b = _pick_block(B_pad, (256, 128, 64, 32, 16, 8))
    block_h = _pick_block(H_pad, (512, 384, 256, 128))

    # Pack activations: [x | z_prev] in bf16 (z is exactly 0/1 -> lossless),
    # state stays f32.
    xz = jnp.zeros((B_pad, K), jnp.bfloat16)
    xz = xz.at[:B, :IN].set(x.astype(jnp.bfloat16))
    xz = xz.at[:B, IN_pad:IN_pad + H].set(z0.astype(jnp.bfloat16))
    v_p = jnp.zeros((B_pad, H_pad), jnp.float32).at[:B, :H].set(v0)
    i_p = jnp.zeros((B_pad, H_pad), jnp.float32).at[:B, :H].set(i0)

    # Grid: (H tiles, B tiles) — B is the inner axis so the weight tile
    # (index_map constant in b) stays resident across the batch sweep.
    grid = (H_pad // block_h, B_pad // block_b)

    state_spec = pl.BlockSpec((block_b, block_h), lambda h, b: (b, h))
    in_specs = [
        pl.BlockSpec((block_b, K), lambda h, b: (b, 0)),   # xz
        state_spec,                                        # v
        state_spec,                                        # i
        pl.BlockSpec((K, block_h), lambda h, b: (0, h)),   # W_cat (resident)
    ]
    out_specs = (state_spec, state_spec, state_spec)
    out_sds = jax.ShapeDtypeStruct((B_pad, H_pad), jnp.float32)

    # Explicit VMEM budget (double-buffered tiles), clamped to be portable
    # across v5e / v6e / v7x.
    tile_bytes = (2 * block_b * K * 2            # xz (bf16)
                  + 2 * K * block_h * 2          # W_cat (bf16)
                  + 2 * 5 * block_b * block_h * 4)  # v, i + 3 outputs (f32)
    vmem_limit = int(min(max(2 * tile_bytes, 32 << 20), 120 << 20))

    z_new, v_new, i_new = pl.pallas_call(
        _lif_cell_kernel,
        grid=grid,
        out_shape=(out_sds, out_sds, out_sds),
        in_specs=in_specs,
        out_specs=out_specs,
        compiler_params=pltpu.CompilerParams(
            dimension_semantics=("parallel", "parallel"),
            vmem_limit_bytes=vmem_limit),
    )(xz, v_p, i_p, wcat)

    z_new = z_new[:B, :H].astype(dtype)
    v_new = v_new[:B, :H].astype(dtype)
    i_new = i_new[:B, :H].astype(dtype)
    return z_new, (z_new, v_new, i_new)


# --------------------------------------------------------------------------
# Plain-JAX reference of the same forward pass (for verification).
# --------------------------------------------------------------------------
def _lif_cell_reference(x, input_weights, recurrent_weights, state=None,
                        matmul_dtype=jnp.float32):
    B = x.shape[0]
    H = input_weights.shape[0]
    if state is None:
        z = jnp.zeros((B, H), jnp.float32)
        v = jnp.full((B, H), V_LEAK, jnp.float32)
        i = jnp.zeros((B, H), jnp.float32)
    else:
        z, v, i = (jnp.asarray(s, jnp.float32) for s in state)
    dv = DT * TAU_MEM_INV * ((V_LEAK - v) + i)
    v_decayed = v + dv
    i_decayed = i - DT * TAU_SYN_INV * i
    z_new = (v_decayed - V_TH > 0.0).astype(jnp.float32)
    v_new = (1.0 - z_new) * v_decayed + z_new * V_RESET
    i_new = (i_decayed
             + jnp.dot(x.astype(matmul_dtype),
                       input_weights.T.astype(matmul_dtype),
                       preferred_element_type=jnp.float32)
             + jnp.dot(z.astype(matmul_dtype),
                       recurrent_weights.T.astype(matmul_dtype),
                       preferred_element_type=jnp.float32))
    return z_new, (z_new, v_new, i_new)


if __name__ == "__main__":
    batch_size = 2
    input_size = 16
    hidden_size = 32

    key = jax.random.PRNGKey(0)
    k_x, k_wi, k_wr, k_z, k_v, k_i = jax.random.split(key, 6)

    # Same shapes/scale as the torch module: randn(hidden, in) * sqrt(2/hidden)
    scale = jnp.sqrt(2.0 / hidden_size)
    input_weights = jax.random.normal(
        k_wi, (hidden_size, input_size), jnp.float32) * scale
    recurrent_weights = jax.random.normal(
        k_wr, (hidden_size, hidden_size), jnp.float32) * scale
    x = jax.random.normal(k_x, (batch_size, input_size), jnp.float32)

    prepared = prepare_lif_weights(input_weights, recurrent_weights)

    # ---- test 1: default (zero) initial state ----
    z_out, (z1, v1, i1) = lif_cell_forward(
        x, input_weights, recurrent_weights, prepared=prepared)
    jax.block_until_ready((z_out, z1, v1, i1))

    zr, (_, vr1, ir1) = _lif_cell_reference(x, input_weights, recurrent_weights)
    assert jnp.array_equal(z_out, zr)
    assert jnp.allclose(v1, vr1, atol=1e-6)
    assert jnp.allclose(i1, ir1, atol=5e-2, rtol=5e-2)          # vs f32 matmul
    _, (_, _, ir1b) = _lif_cell_reference(
        x, input_weights, recurrent_weights, matmul_dtype=jnp.bfloat16)
    assert jnp.allclose(i1, ir1b, atol=1e-3, rtol=1e-3)         # vs bf16 matmul

    # ---- test 2: nonzero random state, some neurons cross V_TH ----
    z0 = (jax.random.uniform(k_z, (batch_size, hidden_size)) > 0.5
          ).astype(jnp.float32)
    v0 = jax.random.uniform(k_v, (batch_size, hidden_size),
                            minval=0.0, maxval=2.0)
    i0 = jax.random.normal(k_i, (batch_size, hidden_size), jnp.float32)
    state = (z0, v0, i0)

    z_out2, (z2, v2, i2) = lif_cell_forward(
        x, input_weights, recurrent_weights, state, prepared=prepared)
    jax.block_until_ready((z_out2, v2, i2))

    zr2, (_, vr2, ir2) = _lif_cell_reference(
        x, input_weights, recurrent_weights, state)
    assert jnp.array_equal(z_out2, zr2)
    assert bool(jnp.any(z_out2 == 1.0)) and bool(jnp.any(z_out2 == 0.0))
    assert jnp.allclose(v2, vr2, atol=1e-6)
    assert jnp.allclose(i2, ir2, atol=5e-2, rtol=5e-2)
    _, (_, _, ir2b) = _lif_cell_reference(
        x, input_weights, recurrent_weights, state, matmul_dtype=jnp.bfloat16)
    assert jnp.allclose(i2, ir2b, atol=1e-3, rtol=1e-3)

    print("KERNEL_OK")
</pallas_src>

<mosaic_0001>
module attributes {stable_mosaic.version = 11 : i64} {
  func.func @_lif_cell_kernel(%arg0: i32, %arg1: i32, %arg2: memref<8x256xbf16, #tpu.memory_space<vmem>>, %arg3: memref<8x128xf32, #tpu.memory_space<vmem>>, %arg4: memref<8x128xf32, #tpu.memory_space<vmem>>, %arg5: memref<256x128xbf16, #tpu.memory_space<vmem>>, %arg6: memref<8x128xf32, #tpu.memory_space<vmem>>, %arg7: memref<8x128xf32, #tpu.memory_space<vmem>>, %arg8: memref<8x128xf32, #tpu.memory_space<vmem>>) attributes {dimension_semantics = [#tpu.dimension_semantics<parallel>, #tpu.dimension_semantics<parallel>], iteration_bounds = array<i64: 1, 1>, scalar_prefetch = 0 : i64, scratch_operands = 0 : i64, tpu.core_type = #tpu.core_type<tc>, window_params = [{transform_indices = @transform_0, window_bounds = array<i64: 8, 256>}, {transform_indices = @transform_1, window_bounds = array<i64: 8, 128>}, {transform_indices = @transform_2, window_bounds = array<i64: 8, 128>}, {transform_indices = @transform_3, window_bounds = array<i64: 256, 128>}, {transform_indices = @transform_4, window_bounds = array<i64: 8, 128>}, {transform_indices = @transform_5, window_bounds = array<i64: 8, 128>}, {transform_indices = @transform_6, window_bounds = array<i64: 8, 128>}]} {
    %c0 = arith.constant 0 : index
    %c0_0 = arith.constant 0 : index
    %0 = vector.load %arg3[%c0, %c0_0] : memref<8x128xf32, #tpu.memory_space<vmem>>, vector<8x128xf32>
    %c0_1 = arith.constant 0 : index
    %c0_2 = arith.constant 0 : index
    %1 = vector.load %arg4[%c0_1, %c0_2] : memref<8x128xf32, #tpu.memory_space<vmem>>, vector<8x128xf32>
    %cst = arith.constant 0.000000e+00 : f32
    %2 = vector.broadcast %cst : f32 to vector<8x128xf32>
    %3 = arith.subf %2, %0 : vector<8x128xf32>
    %4 = arith.addf %3, %1 : vector<8x128xf32>
    %cst_3 = arith.constant 1.000000e-01 : f32
    %5 = vector.broadcast %cst_3 : f32 to vector<8x128xf32>
    %6 = arith.mulf %5, %4 : vector<8x128xf32>
    %7 = arith.addf %0, %6 : vector<8x128xf32>
    %cst_4 = arith.constant 2.000000e-01 : f32
    %8 = vector.broadcast %cst_4 : f32 to vector<8x128xf32>
    %9 = arith.mulf %8, %1 : vector<8x128xf32>
    %10 = arith.subf %1, %9 : vector<8x128xf32>
    %cst_5 = arith.constant 1.000000e+00 : f32
    %11 = vector.broadcast %cst_5 : f32 to vector<8x128xf32>
    %12 = arith.cmpf ogt, %7, %11 : vector<8x128xf32>
    %13 = arith.extui %12 : vector<8x128xi1> to vector<8x128xi32>
    %14 = arith.sitofp %13 : vector<8x128xi32> to vector<8x128xf32>
    %cst_6 = arith.constant 0.000000e+00 : f32
    %15 = vector.broadcast %cst_6 : f32 to vector<8x128xf32>
    %16 = arith.select %12, %15, %7 : vector<8x128xi1>, vector<8x128xf32>
    %c0_7 = arith.constant 0 : index
    %c0_8 = arith.constant 0 : index
    %17 = vector.load %arg2[%c0_7, %c0_8] : memref<8x256xbf16, #tpu.memory_space<vmem>>, vector<8x256xbf16>
    %c0_9 = arith.constant 0 : index
    %c0_10 = arith.constant 0 : index
    %18 = vector.load %arg5[%c0_9, %c0_10] : memref<256x128xbf16, #tpu.memory_space<vmem>>, vector<256x128xbf16>
    %cst_11 = arith.constant dense<0.000000e+00> : vector<8x128xf32>
    %19 = tpu.matmul %17, %18, %cst_11 {dimension_numbers = #tpu.dot_dimension_numbers<[1], [0], [0], [1], [0, 0, 1, 1], [], []>} : vector<8x256xbf16>, vector<256x128xbf16>, vector<8x128xf32> -> vector<8x128xf32>
    %c0_12 = arith.constant 0 : index
    %c0_13 = arith.constant 0 : index
    %20 = vector.load %arg6[%c0_12, %c0_13] : memref<8x128xf32, #tpu.memory_space<vmem>>, vector<8x128xf32>
    tpu.vector_store %arg6[%c0_12, %c0_13], %14 {strides = array<i32>} : memref<8x128xf32, #tpu.memory_space<vmem>>, vector<8x128xf32>,
    %c0_14 = arith.constant 0 : index
    %c0_15 = arith.constant 0 : index
    %21 = vector.load %arg7[%c0_14, %c0_15] : memref<8x128xf32, #tpu.memory_space<vmem>>, vector<8x128xf32>
    tpu.vector_store %arg7[%c0_14, %c0_15], %16 {strides = array<i32>} : memref<8x128xf32, #tpu.memory_space<vmem>>, vector<8x128xf32>,
    %22 = arith.addf %10, %19 : vector<8x128xf32>
    %c0_16 = arith.constant 0 : index
    %c0_17 = arith.constant 0 : index
    %23 = vector.load %arg8[%c0_16, %c0_17] : memref<8x128xf32, #tpu.memory_space<vmem>>, vector<8x128xf32>
    tpu.vector_store %arg8[%c0_16, %c0_17], %22 {strides = array<i32>} : memref<8x128xf32, #tpu.memory_space<vmem>>, vector<8x128xf32>,
    return
  }
  func.func @transform_0(%arg0: i32, %arg1: i32) -> (i32, i32) {
    %c0_i32 = arith.constant 0 : i32
    %c0_i32_0 = arith.constant 0 : i32
    return %arg1, %c0_i32 : i32, i32
  }
  func.func @transform_1(%arg0: i32, %arg1: i32) -> (i32, i32) {
    %c0_i32 = arith.constant 0 : i32
    return %arg1, %arg0 : i32, i32
  }
  func.func @transform_2(%arg0: i32, %arg1: i32) -> (i32, i32) {
    %c0_i32 = arith.constant 0 : i32
    return %arg1, %arg0 : i32, i32
  }
  func.func @transform_3(%arg0: i32, %arg1: i32) -> (i32, i32) {
    %c0_i32 = arith.constant 0 : i32
    %c0_i32_0 = arith.constant 0 : i32
    return %c0_i32, %arg0 : i32, i32
  }
  func.func @transform_4(%arg0: i32, %arg1: i32) -> (i32, i32) {
    %c0_i32 = arith.constant 0 : i32
    return %arg1, %arg0 : i32, i32
  }
  func.func @transform_5(%arg0: i32, %arg1: i32) -> (i32, i32) {
    %c0_i32 = arith.constant 0 : i32
    return %arg1, %arg0 : i32, i32
  }
  func.func @transform_6(%arg0: i32, %arg1: i32) -> (i32, i32) {
    %c0_i32 = arith.constant 0 : i32
    return %arg1, %arg0 : i32, i32
  }
}

</mosaic_0001>

<llo_original>
// kernel: tpu_custom_call.1
$region0: #{tpu_custom_call.1}
  #allocation0 [shape = 'u32[]', space=smem, size = 0x4, offset = 0x4, fixed_abs, tag = 'smem constant byte address 0x4 - core index']
  #allocation1 [shape = 'u32[144,128]{1,0:T(1,128)}', space=vmem, size = 0x12000, scoped, tag = 'internal scratch']
  %s0 = inlined_call_operand.hbm [shape: bf16[8,256], index: 0, kind: input, shape index: {}]
  %s1 = inlined_call_operand.hbm [shape: f32[8,128], index: 1, kind: input, shape index: {}]
  %s2 = inlined_call_operand.hbm [shape: f32[8,128], index: 2, kind: input, shape index: {}]
  %s3 = inlined_call_operand.hbm [shape: bf16[256,128], index: 3, kind: input, shape index: {}]
  %s4 = inlined_call_operand.hbm [shape: f32[8,128], index: 4, kind: output, shape index: {0}]
  %s5 = inlined_call_operand.hbm [shape: f32[8,128], index: 5, kind: output, shape index: {1}]
  %s6 = inlined_call_operand.hbm [shape: f32[8,128], index: 6, kind: output, shape index: {2}]
  %7 = xla_tuple %s4, %s5, %s6
  %s8 = sld [smem:[#allocation0]]
  $region58: #{tpu_custom_call.1} parent=0
    _
  %s10 = ssub.s32 1, %s8
  %s11 = scalar_select 0, %s10, %s8
  $region1: #{tpu_custom_call.1} parent=0
    #allocation2 [shape = 'u8[4096]{0}', space=vmem, size = 0x1000, scoped, tag = 'input window, operand 0, single buffered']
    #allocation3 [shape = 's32[1]{0}', space=sflag, size = 0x4, scoped, tag = 'scoped memory for tpu_custom_call.1']
    #allocation4 [shape = 's32[1]{0}', space=sflag, size = 0x4, scoped, tag = 'scoped memory for tpu_custom_call.1']
    #allocation5 [shape = 'u8[4096]{0}', space=vmem, size = 0x1000, scoped, tag = 'input window, operand 1, single buffered']
    #allocation6 [shape = 's32[1]{0}', space=sflag, size = 0x4, scoped, tag = 'scoped memory for tpu_custom_call.1']
    #allocation7 [shape = 'u8[4096]{0}', space=vmem, size = 0x1000, scoped, tag = 'input window, operand 2, single buffered']
    #allocation8 [shape = 'u8[65536]{0}', space=vmem, size = 0x10000, scoped, tag = 'input window, operand 3, single buffered']
    #allocation9 [shape = 's32[1]{0}', space=sflag, size = 0x4, scoped, tag = 'scoped memory for tpu_custom_call.1']
    #allocation10 [shape = 'u8[4096]{0}', space=vmem, size = 0x1000, scoped, tag = 'output window, operand 0, single buffered']
    #allocation11 [shape = 'u8[4096]{0}', space=vmem, size = 0x1000, scoped, tag = 'output window, operand 1, single buffered']
    #allocation12 [shape = 's32[1]{0}', space=sflag, size = 0x4, scoped, tag = 'scoped memory for tpu_custom_call.1']
    #allocation13 [shape = 'u8[4096]{0}', space=vmem, size = 0x1000, scoped, tag = 'output window, operand 2, single buffered']
    %12 = vsyncpa [#allocation3], 0
    %13 = vsyncpa [#allocation6], 0
    %14 = vsyncpa [#allocation9], 0
    %15 = vsyncpa [#allocation4], 0
    %16 = vsyncpa [#allocation12], 0
    // Predicated region
    $region2: #{tpu_custom_call.1} parent=1 // pred_check
      _
    $region3: #{tpu_custom_call.1} parent=1 // pred_check_branch
      %18 = sbr.rel (0) target = $region5
    $region4: #{tpu_custom_call.1} parent=1 // pred_region
      %s20 = ssub.s32 128, 128
      %21 = vsyncadd [#allocation3], %s20
      %s23 = sshll.u32 [#allocation2], 4
      %s24 = int_to_ptr.vmem [resolvable:$true] %s23
      %26 = dma.hbm_to_vmem [thread:$0]  %s0, 128, %s24, [#allocation3]
    $region5: #{tpu_custom_call.1} parent=1 // pred_fallthru
      _
    // Predicated region
    $region6: #{tpu_custom_call.1} parent=1 // pred_check
      _
    $region7: #{tpu_custom_call.1} parent=1 // pred_check_branch
      %28 = sbr.rel (0) target = $region9
    $region8: #{tpu_custom_call.1} parent=1 // pred_region
      %s30 = ssub.s32 128, 128
      %31 = vsyncadd [#allocation6], %s30
      %s33 = sshll.u32 [#allocation5], 4
      %s34 = int_to_ptr.vmem [resolvable:$true] %s33
      %36 = dma.hbm_to_vmem [thread:$0]  %s1, 128, %s34, [#allocation6]
    $region9: #{tpu_custom_call.1} parent=1 // pred_fallthru
      _
    // Predicated region
    $region10: #{tpu_custom_call.1} parent=1 // pred_check
      _
    $region11: #{tpu_custom_call.1} parent=1 // pred_check_branch
      %38 = sbr.rel (0) target = $region13
    $region12: #{tpu_custom_call.1} parent=1 // pred_region
      %s40 = ssub.s32 128, 128
      %41 = vsyncadd [#allocation6], %s40
      %s43 = sshll.u32 [#allocation7], 4
      %s44 = int_to_ptr.vmem [resolvable:$true] %s43
      %46 = dma.hbm_to_vmem [thread:$0]  %s2, 128, %s44, [#allocation6]
    $region13: #{tpu_custom_call.1} parent=1 // pred_fallthru
      _
    // Predicated region
    $region14: #{tpu_custom_call.1} parent=1 // pred_check
      _
    $region15: #{tpu_custom_call.1} parent=1 // pred_check_branch
      %48 = sbr.rel (0) target = $region17
    $region16: #{tpu_custom_call.1} parent=1 // pred_region
      %s50 = ssub.s32 2048, 2048
      %51 = vsyncadd [#allocation9], %s50
      %s52 = sshll.u32 [#allocation8], 4
      %s53 = int_to_ptr.vmem [resolvable:$true] %s52
      %58 = dma.hbm_to_vmem [thread:$0]  %s3, 2048, %s53, [#allocation9], 64, 64, 4
    $region17: #{tpu_custom_call.1} parent=1 // pred_fallthru
      _
    // Predicated region
    $region18: #{tpu_custom_call.1} parent=1 // pred_check
      _
    $region19: #{tpu_custom_call.1} parent=1 // pred_check_branch
      %60 = sbr.rel (0) target = $region21
    $region20: #{tpu_custom_call.1} parent=1 // pred_region
      %61 = dma.done [#allocation3], 128
    $region21: #{tpu_custom_call.1} parent=1 // pred_fallthru
      _
    // Predicated region
    $region22: #{tpu_custom_call.1} parent=1 // pred_check
      _
    $region23: #{tpu_custom_call.1} parent=1 // pred_check_branch
      %63 = sbr.rel (0) target = $region25
    $region24: #{tpu_custom_call.1} parent=1 // pred_region
      %64 = dma.done [#allocation6], 128
    $region25: #{tpu_custom_call.1} parent=1 // pred_fallthru
      _
    // Predicated region
    $region26: #{tpu_custom_call.1} parent=1 // pred_check
      _
    $region27: #{tpu_custom_call.1} parent=1 // pred_check_branch
      %66 = sbr.rel (0) target = $region29
    $region28: #{tpu_custom_call.1} parent=1 // pred_region
      %67 = dma.done [#allocation6], 128
    $region29: #{tpu_custom_call.1} parent=1 // pred_fallthru
      _
    // Predicated region
    $region30: #{tpu_custom_call.1} parent=1 // pred_check
      _
    $region31: #{tpu_custom_call.1} parent=1 // pred_check_branch
      %69 = sbr.rel (0) target = $region33
    $region32: #{tpu_custom_call.1} parent=1 // pred_region
      %70 = dma.done [#allocation9], 2048
    $region33: #{tpu_custom_call.1} parent=1 // pred_fallthru
      _
    %v72 = vld [vmem:[#allocation5] sm:$0xff]
    %v73 = vld [vmem:[#allocation7] sm:$0xff]
    %v74 = vsub.f32 0.0, %v72
    %v75 = vadd.f32 %v74, %v73
    %v76 = vmul.f32 %v75, 0.1
    %v77 = vadd.f32 %v72, %v76
    %v78 = vmul.f32 %v73, 0.2
    %v79 = vsub.f32 %v73, %v78
    %vm80 = vcmp.gt.f32.partialorder %v77, 1.0
    %v81 = vsel %vm80, 1, 0
    %v82 = vcvt.s32.f32 %v81
    %v83 = vsel %vm80, 0.0, %v77
    %v84 = vld [vmem:[#allocation2] sm:$0xff]
    %v85 = vld [vmem:[#allocation8] sm:$0xf]
    %v86 = vld [vmem:[#allocation8 + $0x4] sm:$0xf]
    %v87 = vld [vmem:[#allocation8 + $0x8] sm:$0xf]
    %v88 = vld [vmem:[#allocation8 + $0xc] sm:$0xf]
    %v89 = vld [vmem:[#allocation8 + $0x10] sm:$0xf]
    %v90 = vld [vmem:[#allocation8 + $0x14] sm:$0xf]
    %v91 = vld [vmem:[#allocation8 + $0x18] sm:$0xf]
    %v92 = vld [vmem:[#allocation8 + $0x1c] sm:$0xf]
    %v93 = vld [vmem:[#allocation8 + $0x20] sm:$0xf]
    %v94 = vld [vmem:[#allocation8 + $0x24] sm:$0xf]
    %v95 = vld [vmem:[#allocation8 + $0x28] sm:$0xf]
    %v96 = vld [vmem:[#allocation8 + $0x2c] sm:$0xf]
    %v97 = vld [vmem:[#allocation8 + $0x30] sm:$0xf]
    %v98 = vld [vmem:[#allocation8 + $0x34] sm:$0xf]
    %v99 = vld [vmem:[#allocation8 + $0x38] sm:$0xf]
    %v100 = vld [vmem:[#allocation8 + $0x3c] sm:$0xf]
    %v101 = vld [vmem:[#allocation8 + $0x40] sm:$0xf]
    %v102 = vld [vmem:[#allocation8 + $0x44] sm:$0xf]
    %v103 = vld [vmem:[#allocation8 + $0x48] sm:$0xf]
    %v104 = vld [vmem:[#allocation8 + $0x4c] sm:$0xf]
    %v105 = vld [vmem:[#allocation8 + $0x50] sm:$0xf]
    %v106 = vld [vmem:[#allocation8 + $0x54] sm:$0xf]
    %v107 = vld [vmem:[#allocation8 + $0x58] sm:$0xf]
    %v108 = vld [vmem:[#allocation8 + $0x5c] sm:$0xf]
    %v109 = vld [vmem:[#allocation8 + $0x60] sm:$0xf]
    %v110 = vld [vmem:[#allocation8 + $0x64] sm:$0xf]
    %v111 = vld [vmem:[#allocation8 + $0x68] sm:$0xf]
    %v112 = vld [vmem:[#allocation8 + $0x6c] sm:$0xf]
    %v113 = vld [vmem:[#allocation8 + $0x70] sm:$0xf]
    %v114 = vld [vmem:[#allocation8 + $0x74] sm:$0xf]
    %v115 = vld [vmem:[#allocation8 + $0x78] sm:$0xf]
    %v116 = vld [vmem:[#allocation8 + $0x7c] sm:$0xf]
    %v118 = vunpack.c.l.b16 %v84
    %v119 = vunpack.c.h.b16 %v84
    %v120 = vpack.c.b16 %v118, %v118
    %v121 = vpack.c.b16 %v119, %v119
    %v156 = vunpack.c.l.b16 %v85
    %v157 = vunpack.c.l.b16 %v86
    %v158 = vunpack.c.l.b16 %v87
    %v159 = vunpack.c.l.b16 %v88
    %v160 = vunpack.c.l.b16 %v89
    %v161 = vunpack.c.l.b16 %v90
    %v162 = vunpack.c.l.b16 %v91
    %v163 = vunpack.c.l.b16 %v92
    %v164 = vunpack.c.l.b16 %v93
    %v165 = vunpack.c.l.b16 %v94
    %v166 = vunpack.c.l.b16 %v95
    %v167 = vunpack.c.l.b16 %v96
    %v168 = vunpack.c.l.b16 %v97
    %v169 = vunpack.c.l.b16 %v98
    %v170 = vunpack.c.l.b16 %v99
    %v171 = vunpack.c.l.b16 %v100
    %v172 = vunpack.c.l.b16 %v101
    %v173 = vunpack.c.l.b16 %v102
    %v174 = vunpack.c.l.b16 %v103
    %v175 = vunpack.c.l.b16 %v104
    %v176 = vunpack.c.l.b16 %v105
    %v177 = vunpack.c.l.b16 %v106
    %v178 = vunpack.c.l.b16 %v107
    %v179 = vunpack.c.l.b16 %v108
    %v180 = vunpack.c.l.b16 %v109
    %v181 = vunpack.c.l.b16 %v110
    %v182 = vunpack.c.l.b16 %v111
    %v183 = vunpack.c.l.b16 %v112
    %v184 = vunpack.c.l.b16 %v113
    %v185 = vunpack.c.l.b16 %v114
    %v186 = vunpack.c.l.b16 %v115
    %v187 = vunpack.c.l.b16 %v116
    %v188 = vpack.c.b16 %v157, %v156
    %v189 = vpack.c.b16 %v159, %v158
    %v190 = vpack.c.b16 %v161, %v160
    %v191 = vpack.c.b16 %v163, %v162
    %v192 = vpack.c.b16 %v165, %v164
    %v193 = vpack.c.b16 %v167, %v166
    %v194 = vpack.c.b16 %v169, %v168
    %v195 = vpack.c.b16 %v171, %v170
    %v196 = vpack.c.b16 %v173, %v172
    %v197 = vpack.c.b16 %v175, %v174
    %v198 = vpack.c.b16 %v177, %v176
    %v199 = vpack.c.b16 %v179, %v178
    %v200 = vpack.c.b16 %v181, %v180
    %v201 = vpack.c.b16 %v183, %v182
    %v202 = vpack.c.b16 %v185, %v184
    %v203 = vpack.c.b16 %v187, %v186
    %220 = vmatprep.subr.bf16.mxu0 0
    %221 = vmatpush1.bf16.msra.mxu0 %v188
    %222 = vmatprep.subr.bf16.mxu0 0
    %223 = vmatpush1.bf16.msra.mxu0 %v189
    %224 = vmatprep.subr.bf16.mxu0 0
    %225 = vmatpush1.bf16.msra.mxu0 %v190
    %226 = vmatprep.subr.bf16.mxu0 0
    %227 = vmatpush1.bf16.msra.mxu0 %v191
    %228 = vmatprep.subr.bf16.mxu0 0
    %229 = vmatpush1.bf16.msra.mxu0 %v192
    %230 = vmatprep.subr.bf16.mxu0 0
    %231 = vmatpush1.bf16.msra.mxu0 %v193
    %232 = vmatprep.subr.bf16.mxu0 0
    %233 = vmatpush1.bf16.msra.mxu0 %v194
    %234 = vmatprep.subr.bf16.mxu0 0
    %235 = vmatpush1.bf16.msra.mxu0 %v195
    %236 = vmatprep.subr.bf16.mxu0 0
    %237 = vmatpush1.bf16.msra.mxu0 %v196
    %238 = vmatprep.subr.bf16.mxu0 0
    %239 = vmatpush1.bf16.msra.mxu0 %v197
    %240 = vmatprep.subr.bf16.mxu0 0
    %241 = vmatpush1.bf16.msra.mxu0 %v198
    %242 = vmatprep.subr.bf16.mxu0 0
    %243 = vmatpush1.bf16.msra.mxu0 %v199
    %244 = vmatprep.subr.bf16.mxu0 0
    %245 = vmatpush1.bf16.msra.mxu0 %v200
    %246 = vmatprep.subr.bf16.mxu0 0
    %247 = vmatpush1.bf16.msra.mxu0 %v201
    %248 = vmatprep.subr.bf16.mxu0 0
    %249 = vmatpush1.bf16.msra.mxu0 %v202
    %250 = vmatprep.subr.bf16.mxu0 0
    %251 = vmatpush1.bf16.msra.mxu0 %v203
    %252 = vmatprep.mubr.bf16.mxu0 %v121
    %253 = vmatmul.mubr.bf16.gmra.mrb[0].mxu0 %v120
    %v254 = vpop.f32.mrb[0].mxu0
    %v255 = vadd.f32 0.0, %v254
    %v256 = vpop.f32.mrb[0].mxu0
    %v257 = vpop.f32.mrb[0].mxu0
    %v258 = vpop.f32.mrb[0].mxu0
    %259 = vdwg.mxu0
    %260 = vst [vmem:[#allocation10] sm:$0xff] %v82
    %261 = vst [vmem:[#allocation11] sm:$0xff] %v83
    %v262 = vadd.f32 %v79, %v255
    %263 = vst [vmem:[#allocation13] sm:$0xff] %v262
    // Predicated region
    $region34: #{tpu_custom_call.1} parent=1 // pred_check
      _
    $region35: #{tpu_custom_call.1} parent=1 // pred_check_branch
      %265 = sbr.rel (0) target = $region37
    $region36: #{tpu_custom_call.1} parent=1 // pred_region
      %s267 = ssub.s32 128, 128
      %268 = vsyncadd [#allocation4], %s267
      %s270 = sshll.u32 [#allocation10], 4
      %s271 = int_to_ptr.vmem [resolvable:$true] %s270
      %273 = dma.vmem_to_hbm [thread:$0]  %s271, 128, %s4, [#allocation4]
    $region37: #{tpu_custom_call.1} parent=1 // pred_fallthru
      _
    // Predicated region
    $region38: #{tpu_custom_call.1} parent=1 // pred_check
      _
    $region39: #{tpu_custom_call.1} parent=1 // pred_check_branch
      %275 = sbr.rel (0) target = $region41
    $region40: #{tpu_custom_call.1} parent=1 // pred_region
      %s277 = ssub.s32 128, 128
      %278 = vsyncadd [#allocation12], %s277
      %s280 = sshll.u32 [#allocation11], 4
      %s281 = int_to_ptr.vmem [resolvable:$true] %s280
      %283 = dma.vmem_to_hbm [thread:$0]  %s281, 128, %s5, [#allocation12]
    $region41: #{tpu_custom_call.1} parent=1 // pred_fallthru
      _
    // Predicated region
    $region42: #{tpu_custom_call.1} parent=1 // pred_check
      _
    $region43: #{tpu_custom_call.1} parent=1 // pred_check_branch
      %285 = sbr.rel (0) target = $region45
    $region44: #{tpu_custom_call.1} parent=1 // pred_region
      %s287 = ssub.s32 128, 128
      %288 = vsyncadd [#allocation12], %s287
      %s290 = sshll.u32 [#allocation13], 4
      %s291 = int_to_ptr.vmem [resolvable:$true] %s290
      %293 = dma.vmem_to_hbm [thread:$0]  %s291, 128, %s6, [#allocation12]
    $region45: #{tpu_custom_call.1} parent=1 // pred_fallthru
      _
    // Predicated region
    $region46: #{tpu_custom_call.1} parent=1 // pred_check
      _
    $region47: #{tpu_custom_call.1} parent=1 // pred_check_branch
      %295 = sbr.rel (0) target = $region49
    $region48: #{tpu_custom_call.1} parent=1 // pred_region
      %296 = dma.done [#allocation4], 128
    $region49: #{tpu_custom_call.1} parent=1 // pred_fallthru
      _
    // Predicated region
    $region50: #{tpu_custom_call.1} parent=1 // pred_check
      _
    $region51: #{tpu_custom_call.1} parent=1 // pred_check_branch
      %298 = sbr.rel (0) target = $region53
    $region52: #{tpu_custom_call.1} parent=1 // pred_region
      %299 = dma.done [#allocation12], 128
    $region53: #{tpu_custom_call.1} parent=1 // pred_fallthru
      _
    // Predicated region
    $region54: #{tpu_custom_call.1} parent=1 // pred_check
      _
    $region55: #{tpu_custom_call.1} parent=1 // pred_check_branch
      %301 = sbr.rel (0) target = $region57
    $region56: #{tpu_custom_call.1} parent=1 // pred_region
      %302 = dma.done [#allocation12], 128
    $region57: #{tpu_custom_call.1} parent=1 // pred_fallthru
      _
    %303 = vsyncpa [#allocation3], 1
    %304 = vsyncpa [#allocation6], 1
    %305 = vsyncpa [#allocation9], 1
    %306 = vsyncpa [#allocation4], 1
    %307 = vsyncpa [#allocation12], 1

</llo_original>
